<compile_context>
chip_gen: v5e
topology: v5e:2x2
jax: 0.10.0
libtpu: 0.0.40
codegen_flags: <defaults>
</compile_context>

<pallas_src>
import functools

import jax
import jax.numpy as jnp
from jax import lax
from jax.experimental import pallas as pl
from jax.experimental.pallas import tpu as pltpu

LANE = 128      # lane width (last dim)
SUBLANE = 8     # f32/bf16-safe sublane granularity for batch tiles


def _round_up(n, m):
    return ((n + m - 1) // m) * m


# ------------------------------ fused kernel ------------------------------- #

def _fused_mlp_kernel(n_layers, num_classes, x_ref, *refs):
    """refs = (w1, b1, w2, b2, ..., wn, bn, o_ref).

    Weights and activations are bf16 (MXU inputs); accumulation, bias add,
    ReLU and the log-softmax epilogue are f32.  All layers run back-to-back
    with the activation kept on-chip; only the final logits are stored.
    """
    o_ref = refs[-1]
    wb = refs[:-1]

    h = x_ref[...]                                         # (Bt, in_pad) bf16
    for li in range(n_layers):
        w = wb[2 * li][...]                                # (in_pad, out_pad) bf16
        b = wb[2 * li + 1][...]                            # (1, out_pad) f32
        y = jnp.dot(h, w, preferred_element_type=jnp.float32) + b   # f32
        if li < n_layers - 1:
            h = jnp.maximum(y, 0.0).astype(w.dtype)        # ReLU, back to bf16 for MXU
        else:
            # log_softmax over the real class lanes only.  Padded lanes are
            # excluded from max / sum(exp) via a mask; they are NOT rewritten
            # with -inf (the wrapper slices them off).  The mask is skipped
            # entirely when the class dim is already lane-aligned.
            if num_classes == y.shape[1]:
                y_m = y
            else:
                col = lax.broadcasted_iota(jnp.int32, y.shape, 1)
                y_m = jnp.where(col < num_classes, y, -1e30)
            m = jnp.max(y_m, axis=1, keepdims=True)
            s = jnp.sum(jnp.exp(y_m - m), axis=1, keepdims=True)
            o_ref[...] = (y - (m + jnp.log(s))).astype(o_ref.dtype)


# ------------------------------ param prep --------------------------------- #

def prepare_dnn_params(params, input_dim, compute_dtype=jnp.bfloat16):
    """Pad every feature dim to a multiple of 128 and cast weights to the MXU
    input dtype.  Call ONCE and reuse across forward calls: this hoists the
    pad/cast HBM traffic out of the per-call forward path."""
    dims = [input_dim] + [w.shape[1] for (w, _) in params]
    dims_pad = [_round_up(d, LANE) for d in dims]
    padded = []
    for li, (w, b) in enumerate(params):
        in_d, out_d = w.shape
        in_p, out_p = dims_pad[li], dims_pad[li + 1]
        w_p = jnp.zeros((in_p, out_p), compute_dtype).at[:in_d, :out_d].set(
            w.astype(compute_dtype))
        b_p = jnp.zeros((1, out_p), jnp.float32).at[:, :out_d].set(
            b.reshape(1, -1).astype(jnp.float32))
        padded.append((w_p, b_p))
    return tuple(padded)


# ------------------------------ wrapper ------------------------------------ #

def dnn_forward(x, padded_params, *, num_classes, out_dtype=jnp.float32):
    """x: (batch, input_dim).  padded_params: output of prepare_dnn_params."""
    batch, input_dim = x.shape
    n_layers = len(padded_params)
    dims_pad = [padded_params[0][0].shape[0]] + [w.shape[1] for (w, _) in padded_params]
    in_pad, out_pad = dims_pad[0], dims_pad[-1]
    compute_dtype = padded_params[0][0].dtype

    # Batch tiling: >=2 tiles whenever batch > 8 (lets the "parallel" axis
    # shard across v7x's two TensorCores) and <=512 rows per tile (per-step
    # overhead amortized, near HBM roofline on v5e/v6e for mem-bound tiles).
    if batch <= SUBLANE:
        block_b = _round_up(max(batch, 1), SUBLANE)
    else:
        block_b = min(512, _round_up((batch + 1) // 2, SUBLANE))
    batch_pad = _round_up(batch, block_b)

    # Pad + cast the activations once on the wrapper side (bf16 halves the
    # x-tile DMA bytes and removes the first-layer cast inside the kernel).
    x_p = jnp.zeros((batch_pad, in_pad), compute_dtype)
    x_p = x_p.at[:batch, :input_dim].set(x.astype(compute_dtype))

    flat_params = [t for pair in padded_params for t in pair]

    in_specs = [pl.BlockSpec((block_b, in_pad), lambda i: (i, 0))]
    for li in range(n_layers):
        ip, op = dims_pad[li], dims_pad[li + 1]
        # Grid-invariant (VMEM-resident) weights & biases.
        # TODO(synk): for layers whose padded weight exceeds ~1/3 of VMEM
        # (v7x: 64 MiB physical), switch that layer to a K-tiled inner
        # pltpu.emit_pipeline instead of whole-weight residency.
        in_specs.append(pl.BlockSpec((ip, op), lambda i: (0, 0)))
        in_specs.append(pl.BlockSpec((1, op), lambda i: (0, 0)))

    # VMEM budget from the actual footprint (worst case: everything
    # double-buffered by the auto-pipeliner) with a little headroom.
    cbytes = jnp.dtype(compute_dtype).itemsize
    obytes = jnp.dtype(out_dtype).itemsize
    weight_bytes = sum(dims_pad[i] * dims_pad[i + 1] for i in range(n_layers)) * cbytes
    bias_bytes = sum(dims_pad[1:]) * 4
    x_tile_bytes = block_b * in_pad * cbytes
    o_tile_bytes = block_b * out_pad * obytes
    footprint = 2 * (weight_bytes + bias_bytes + x_tile_bytes + o_tile_bytes)
    vmem_limit = int(max(32 << 20, min(64 << 20, footprint + (4 << 20))))

    flops = 2 * batch_pad * sum(dims_pad[i] * dims_pad[i + 1] for i in range(n_layers))
    cost = pl.CostEstimate(
        flops=flops,
        transcendentals=batch_pad * out_pad + batch_pad,        # exp + log
        bytes_accessed=(batch_pad * in_pad * cbytes + weight_bytes + bias_bytes
                        + batch_pad * out_pad * obytes),
    )

    out = pl.pallas_call(
        functools.partial(_fused_mlp_kernel, n_layers, num_classes),
        out_shape=jax.ShapeDtypeStruct((batch_pad, out_pad), out_dtype),
        grid=(batch_pad // block_b,),
        in_specs=in_specs,
        out_specs=pl.BlockSpec((block_b, out_pad), lambda i: (i, 0)),
        compiler_params=pltpu.CompilerParams(
            dimension_semantics=("parallel",),
            vmem_limit_bytes=vmem_limit),
        cost_estimate=cost,
    )(x_p, *flat_params)

    return out[:batch, :num_classes]


dnn_forward_jit = jax.jit(dnn_forward, static_argnames=("num_classes", "out_dtype"))


# --------------------------- init & references ------------------------------ #

def init_dnn_params(key, input_dim, hidden_layers, num_classes):
    """Replicates DNN._initialize_parameters():
       kaiming_normal_ weights (std = sqrt(2 / fan_in)), normal(std=0.01) bias.
       Weights stored transposed: (in_features, out_features)."""
    dims = [input_dim] + list(hidden_layers) + [num_classes]
    params = []
    for i in range(len(dims) - 1):
        fan_in, fan_out = dims[i], dims[i + 1]
        key, kw, kb = jax.random.split(key, 3)
        std = (2.0 / fan_in) ** 0.5
        w = std * jax.random.normal(kw, (fan_in, fan_out), dtype=jnp.float32)
        b = 0.01 * jax.random.normal(kb, (1, fan_out), dtype=jnp.float32)
        params.append((w, b))
    return tuple(params)


def dnn_forward_ref(x, params, mxu_bf16):
    """Pure-JAX reference. mxu_bf16=True mimics the kernel's compute dtypes
    (bf16 MXU inputs / activations, f32 accumulation + epilogue)."""
    n = len(params)
    h = x.astype(jnp.bfloat16) if mxu_bf16 else x
    for i, (w, b) in enumerate(params):
        if mxu_bf16:
            y = jnp.dot(h, w.astype(jnp.bfloat16),
                        preferred_element_type=jnp.float32) + b
        else:
            y = h @ w + b
        if i < n - 1:
            h = jnp.maximum(y, 0.0)
            if mxu_bf16:
                h = h.astype(jnp.bfloat16)
        else:
            h = y
    return jax.nn.log_softmax(h, axis=1)


# ---------------------------------- main ------------------------------------ #

if __name__ == "__main__":
    # Small shapes consistent with the module's forward (2-D input MLP).
    batch = 16                 # >8 so the batch grid has 2 parallel tiles
    input_dim = 200            # non-multiple of 128 to exercise lane padding
    hidden_layers = [64, 32]
    num_classes = 16

    key = jax.random.PRNGKey(0)
    key, kx = jax.random.split(key)
    x = jax.random.normal(kx, (batch, input_dim), dtype=jnp.float32)
    params = init_dnn_params(key, input_dim, hidden_layers, num_classes)

    # One-time preprocessing (pad to lane multiples, cast weights to bf16).
    padded_params = prepare_dnn_params(params, input_dim)

    out = dnn_forward_jit(x, padded_params, num_classes=num_classes)
    out = jax.block_until_ready(out)
    assert out.shape == (batch, num_classes)

    # Tight check vs a reference using the same bf16-in / f32-accum math.
    ref_bf16 = dnn_forward_ref(x, params, mxu_bf16=True)
    assert jnp.allclose(out, ref_bf16, atol=2e-3, rtol=2e-3), "mismatch vs bf16 reference"

    # Loose sanity check vs the pure-f32 PyTorch-equivalent math.
    ref_f32 = dnn_forward_ref(x, params, mxu_bf16=False)
    assert jnp.allclose(out, ref_f32, atol=1e-1, rtol=1e-1), "mismatch vs f32 reference"

    # log_softmax rows should sum to ~1 in probability space.
    assert jnp.allclose(jnp.exp(out).sum(axis=1), 1.0, atol=1e-3)

    print("KERNEL_OK")
</pallas_src>

<mosaic_0001>
module attributes {stable_mosaic.version = 11 : i64} {
  func.func @_fused_mlp_kernel(%arg0: i32, %arg1: memref<8x256xbf16, #tpu.memory_space<vmem>>, %arg2: memref<256x128xbf16, #tpu.memory_space<vmem>>, %arg3: memref<1x128xf32, #tpu.memory_space<vmem>>, %arg4: memref<128x128xbf16, #tpu.memory_space<vmem>>, %arg5: memref<1x128xf32, #tpu.memory_space<vmem>>, %arg6: memref<128x128xbf16, #tpu.memory_space<vmem>>, %arg7: memref<1x128xf32, #tpu.memory_space<vmem>>, %arg8: memref<8x128xf32, #tpu.memory_space<vmem>>) attributes {dimension_semantics = [#tpu.dimension_semantics<parallel>], iteration_bounds = array<i64: 2>, scalar_prefetch = 0 : i64, scratch_operands = 0 : i64, tpu.core_type = #tpu.core_type<tc>, window_params = [{transform_indices = @transform_0, window_bounds = array<i64: 8, 256>}, {pipeline_mode = #tpu.pipeline_mode<synchronous>, transform_indices = @transform_1, window_bounds = array<i64: 256, 128>}, {pipeline_mode = #tpu.pipeline_mode<synchronous>, transform_indices = @transform_2, window_bounds = array<i64: 1, 128>}, {pipeline_mode = #tpu.pipeline_mode<synchronous>, transform_indices = @transform_3, window_bounds = array<i64: 128, 128>}, {pipeline_mode = #tpu.pipeline_mode<synchronous>, transform_indices = @transform_4, window_bounds = array<i64: 1, 128>}, {pipeline_mode = #tpu.pipeline_mode<synchronous>, transform_indices = @transform_5, window_bounds = array<i64: 128, 128>}, {pipeline_mode = #tpu.pipeline_mode<synchronous>, transform_indices = @transform_6, window_bounds = array<i64: 1, 128>}, {transform_indices = @transform_7, window_bounds = array<i64: 8, 128>}]} {
    %c0 = arith.constant 0 : index
    %c0_0 = arith.constant 0 : index
    %0 = vector.load %arg1[%c0, %c0_0] : memref<8x256xbf16, #tpu.memory_space<vmem>>, vector<8x256xbf16>
    %c0_1 = arith.constant 0 : index
    %c0_2 = arith.constant 0 : index
    %1 = vector.load %arg2[%c0_1, %c0_2] : memref<256x128xbf16, #tpu.memory_space<vmem>>, vector<256x128xbf16>
    %c0_3 = arith.constant 0 : index
    %c0_4 = arith.constant 0 : index
    %2 = vector.load %arg3[%c0_3, %c0_4] : memref<1x128xf32, #tpu.memory_space<vmem>>, vector<1x128xf32>
    %cst = arith.constant dense<0.000000e+00> : vector<8x128xf32>
    %3 = tpu.matmul %0, %1, %cst {dimension_numbers = #tpu.dot_dimension_numbers<[1], [0], [0], [1], [0, 0, 1, 1], [], []>} : vector<8x256xbf16>, vector<256x128xbf16>, vector<8x128xf32> -> vector<8x128xf32>
    %4 = vector.broadcast %2 : vector<1x128xf32> to vector<8x128xf32>
    %5 = arith.addf %3, %4 : vector<8x128xf32>
    %cst_5 = arith.constant 0.000000e+00 : f32
    %6 = vector.broadcast %cst_5 : f32 to vector<8x128xf32>
    %7 = arith.maximumf %5, %6 : vector<8x128xf32>
    %8 = arith.truncf %7 : vector<8x128xf32> to vector<8x128xbf16>
    %c0_6 = arith.constant 0 : index
    %c0_7 = arith.constant 0 : index
    %9 = vector.load %arg4[%c0_6, %c0_7] : memref<128x128xbf16, #tpu.memory_space<vmem>>, vector<128x128xbf16>
    %c0_8 = arith.constant 0 : index
    %c0_9 = arith.constant 0 : index
    %10 = vector.load %arg5[%c0_8, %c0_9] : memref<1x128xf32, #tpu.memory_space<vmem>>, vector<1x128xf32>
    %cst_10 = arith.constant dense<0.000000e+00> : vector<8x128xf32>
    %11 = tpu.matmul %8, %9, %cst_10 {dimension_numbers = #tpu.dot_dimension_numbers<[1], [0], [0], [1], [0, 0, 1, 1], [], []>} : vector<8x128xbf16>, vector<128x128xbf16>, vector<8x128xf32> -> vector<8x128xf32>
    %12 = vector.broadcast %10 : vector<1x128xf32> to vector<8x128xf32>
    %13 = arith.addf %11, %12 : vector<8x128xf32>
    %cst_11 = arith.constant 0.000000e+00 : f32
    %14 = vector.broadcast %cst_11 : f32 to vector<8x128xf32>
    %15 = arith.maximumf %13, %14 : vector<8x128xf32>
    %16 = arith.truncf %15 : vector<8x128xf32> to vector<8x128xbf16>
    %c0_12 = arith.constant 0 : index
    %c0_13 = arith.constant 0 : index
    %17 = vector.load %arg6[%c0_12, %c0_13] : memref<128x128xbf16, #tpu.memory_space<vmem>>, vector<128x128xbf16>
    %c0_14 = arith.constant 0 : index
    %c0_15 = arith.constant 0 : index
    %18 = vector.load %arg7[%c0_14, %c0_15] : memref<1x128xf32, #tpu.memory_space<vmem>>, vector<1x128xf32>
    %cst_16 = arith.constant dense<0.000000e+00> : vector<8x128xf32>
    %19 = tpu.matmul %16, %17, %cst_16 {dimension_numbers = #tpu.dot_dimension_numbers<[1], [0], [0], [1], [0, 0, 1, 1], [], []>} : vector<8x128xbf16>, vector<128x128xbf16>, vector<8x128xf32> -> vector<8x128xf32>
    %20 = vector.broadcast %18 : vector<1x128xf32> to vector<8x128xf32>
    %21 = arith.addf %19, %20 : vector<8x128xf32>
    %22 = tpu.iota {dimensions = array<i32: 1>} : vector<8x128xi32>
    %c16_i32 = arith.constant 16 : i32
    %23 = vector.broadcast %c16_i32 : i32 to vector<8x128xi32>
    %24 = arith.cmpi slt, %22, %23 : vector<8x128xi32>
    %cst_17 = arith.constant -1.000000e+30 : f32
    %25 = vector.broadcast %cst_17 : f32 to vector<8x128xf32>
    %26 = arith.select %24, %21, %25 : vector<8x128xi1>, vector<8x128xf32>
    %cst_18 = arith.constant dense<0xFF800000> : vector<8xf32>
    %27 = vector.multi_reduction <maximumf>, %26, %cst_18 [1] : vector<8x128xf32> to vector<8xf32>
    %28 = vector.shape_cast %27 : vector<8xf32> to vector<8x1xf32>
    %29 = vector.broadcast %28 : vector<8x1xf32> to vector<8x128xf32>
    %30 = arith.subf %26, %29 : vector<8x128xf32>
    %31 = math.exp %30 : vector<8x128xf32>
    %cst_19 = arith.constant dense<0.000000e+00> : vector<8xf32>
    %32 = vector.multi_reduction <add>, %31, %cst_19 [1] : vector<8x128xf32> to vector<8xf32>
    %33 = vector.shape_cast %32 : vector<8xf32> to vector<8x1xf32>
    %34 = math.log %33 : vector<8x1xf32>
    %35 = arith.addf %28, %34 : vector<8x1xf32>
    %36 = vector.broadcast %35 : vector<8x1xf32> to vector<8x128xf32>
    %37 = arith.subf %21, %36 : vector<8x128xf32>
    %c0_20 = arith.constant 0 : index
    %c0_21 = arith.constant 0 : index
    %38 = vector.load %arg8[%c0_20, %c0_21] : memref<8x128xf32, #tpu.memory_space<vmem>>, vector<8x128xf32>
    tpu.vector_store %arg8[%c0_20, %c0_21], %37 {strides = array<i32>} : memref<8x128xf32, #tpu.memory_space<vmem>>, vector<8x128xf32>,
    return
  }
  func.func @transform_0(%arg0: i32) -> (i32, i32) {
    %c0_i32 = arith.constant 0 : i32
    %c0_i32_0 = arith.constant 0 : i32
    return %arg0, %c0_i32 : i32, i32
  }
  func.func @transform_1(%arg0: i32) -> (i32, i32) {
    %c0_i32 = arith.constant 0 : i32
    %c0_i32_0 = arith.constant 0 : i32
    %c0_i32_1 = arith.constant 0 : i32
    return %c0_i32, %c0_i32_0 : i32, i32
  }
  func.func @transform_2(%arg0: i32) -> (i32, i32) {
    %c0_i32 = arith.constant 0 : i32
    %c0_i32_0 = arith.constant 0 : i32
    %c0_i32_1 = arith.constant 0 : i32
    return %c0_i32, %c0_i32_0 : i32, i32
  }
  func.func @transform_3(%arg0: i32) -> (i32, i32) {
    %c0_i32 = arith.constant 0 : i32
    %c0_i32_0 = arith.constant 0 : i32
    %c0_i32_1 = arith.constant 0 : i32
    return %c0_i32, %c0_i32_0 : i32, i32
  }
  func.func @transform_4(%arg0: i32) -> (i32, i32) {
    %c0_i32 = arith.constant 0 : i32
    %c0_i32_0 = arith.constant 0 : i32
    %c0_i32_1 = arith.constant 0 : i32
    return %c0_i32, %c0_i32_0 : i32, i32
  }
  func.func @transform_5(%arg0: i32) -> (i32, i32) {
    %c0_i32 = arith.constant 0 : i32
    %c0_i32_0 = arith.constant 0 : i32
    %c0_i32_1 = arith.constant 0 : i32
    return %c0_i32, %c0_i32_0 : i32, i32
  }
  func.func @transform_6(%arg0: i32) -> (i32, i32) {
    %c0_i32 = arith.constant 0 : i32
    %c0_i32_0 = arith.constant 0 : i32
    %c0_i32_1 = arith.constant 0 : i32
    return %c0_i32, %c0_i32_0 : i32, i32
  }
  func.func @transform_7(%arg0: i32) -> (i32, i32) {
    %c0_i32 = arith.constant 0 : i32
    %c0_i32_0 = arith.constant 0 : i32
    return %arg0, %c0_i32 : i32, i32
  }
}

</mosaic_0001>

<llo_original>
// kernel: dnn_forward.1
$region0: #{dnn_forward.1}
  #allocation0 [shape = 'u32[]', space=smem, size = 0x4, offset = 0x4, fixed_abs, tag = 'smem constant byte address 0x4 - core index']
  #allocation1 [shape = 'u32[72,128]{1,0:T(1,128)}', space=vmem, size = 0x9000, scoped, tag = 'internal scratch']
  %s0 = inlined_call_operand.vmem [shape: bf16[16,256], index: 0, kind: input, shape index: {}]
  %s1 = inlined_call_operand.hbm [shape: bf16[256,128], index: 1, kind: input, shape index: {}]
  %s2 = inlined_call_operand.vmem [shape: f32[1,128], index: 2, kind: input, shape index: {}]
  %s3 = inlined_call_operand.vmem [shape: bf16[128,128], index: 3, kind: input, shape index: {}]
  %s4 = inlined_call_operand.vmem [shape: f32[1,128], index: 4, kind: input, shape index: {}]
  %s5 = inlined_call_operand.hbm [shape: bf16[128,128], index: 5, kind: input, shape index: {}]
  %s6 = inlined_call_operand.vmem [shape: f32[1,128], index: 6, kind: input, shape index: {}]
  %s7 = inlined_call_operand.hbm [shape: f32[16,128], index: 7, kind: output, shape index: {}]
  %s8 = sld [smem:[#allocation0]]
  $region69: #{dnn_forward.1} parent=0
    _
  %s10 = ssub.s32 1, %s8
  %s11 = scalar_select 0, %s10, %s8
  $region1: #{dnn_forward.1} parent=0
    #allocation2 [shape = 'u8[65536]{0}', space=vmem, size = 0x10000, scoped, tag = 'input window, operand 1, single buffered']
    #allocation3 [shape = 's32[2]{0}', space=sflag, size = 0x8, scoped, tag = 'scoped memory for dnn_forward.1']
    #allocation4 [shape = 's32[2]{0}', space=sflag, size = 0x8, scoped, tag = 'scoped memory for dnn_forward.1']
    #allocation5 [shape = 'u8[32768]{0}', space=vmem, size = 0x8000, scoped, tag = 'input window, operand 5, single buffered']
    #allocation6 [shape = 's32[1]{0}', space=sflag, size = 0x4, scoped, tag = 'scoped memory for dnn_forward.1']
    #allocation7 [shape = 'u8[8192]{0}', space=vmem, size = 0x2000, scoped, tag = 'output window, operand 0']
    %12 = vsyncpa [#allocation3], 0
    %13 = vsyncpa [#allocation6], 0
    %14 = vsyncpa [#allocation4], 0
    %s15 = scalar_lea.sflag [#allocation4], 1
    %16 = vsyncpa %s15, 0
    loop: start=0, step=1, limit=4
    $region2: #{dnn_forward.1} parent=1 // loop_pre_header
      _
    $region3: #{dnn_forward.1} parent=1 // loop_header
      %s18 = sphi 0, %s22
      %p19 = scmp.ge.s32.totalorder %s18, 4
      %s28 = sphi 0, %s30
      %s31 = sphi 0, %s28
      %s32 = sphi 0, %s31
      %s48 = sphi 0, %s32
      %s52 = sphi 0, %s52
      %s54 = sphi 0, %s52
      %s55 = sphi 0, %s54
      %s69 = sphi 0, %s55
      %s73 = sphi 0, %s73
      %s75 = sphi 0, %s73
      %s76 = sphi 0, %s75
      %s90 = sphi 0, %s76
      %s94 = sphi 0, %s94
      %s96 = sphi 0, %s94
      %s97 = sphi 0, %s96
      %s111 = sphi 0, %s97
      %s115 = sphi 0, %s115
      %s117 = sphi 0, %s115
      %s118 = sphi 0, %s117
      %s132 = sphi 0, %s118
      %s136 = sphi 0, %s136
      %s138 = sphi 0, %s136
      %s139 = sphi 0, %s138
      %s153 = sphi 0, %s139
      %s157 = sphi 0, %s157
      %s159 = sphi 0, %s157
      %s160 = sphi 0, %s159
      %s174 = sphi 0, %s160
      %s180 = sphi 0, %s182
      %s183 = sphi 0, %s180
      %s184 = sphi 0, %s183
      %s200 = sphi 0, %s184
    $region4: #{dnn_forward.1} parent=1 // loop_header_branch
      %21 = sbr.rel (%p19) target = $region8
    $region5: #{dnn_forward.1} parent=1 // loop_body
      %s23 = ssub.s32 %s18, 1
      %s24 = ssub.s32 %s18, 2
      %s25 = sadd.s32 %s18, 1
      %s26 = ssub.s32 %s18, %s25
      %p27 = scmp.eq.s32.totalorder %s26, 0
      %s29 = sadd.s32 %s28, 1
      %s30 = scalar_select %p27, %s28, %s29
      %p33 = pneg %p27
      %p34 = scmp.eq.s32.totalorder %s18, 1
      %p35 = por %p33, %p34
      %p36 = scmp.ne.s32.totalorder %s28, %s31
      %p37 = scmp.eq.s32.totalorder %s18, 0
      %p38 = por %p36, %p37
      %p39 = scmp.ne.s32.totalorder %s28, %s31
      %p40 = scmp.eq.s32.totalorder %s23, 1
      %p41 = por %p39, %p40
      %p42 = scmp.ne.s32.totalorder %s31, %s32
      %p43 = scmp.eq.s32.totalorder %s23, 0
      %p44 = por %p42, %p43
      %p45 = scmp.ne.s32.totalorder %s31, %s32
      %p46 = scmp.eq.s32.totalorder %s24, 1
      %p47 = por %p45, %p46
      %p49 = scmp.ne.s32.totalorder %s32, %s48
      %p50 = scmp.eq.s32.totalorder %s24, 0
      %p51 = por %p49, %p50
      %s53 = sadd.s32 %s52, 1
      %p56 = scmp.eq.s32.totalorder %s18, 1
      %p57 = scmp.ne.s32.totalorder %s52, %s54
      %p58 = scmp.eq.s32.totalorder %s18, 0
      %p59 = por %p57, %p58
      %p60 = scmp.ne.s32.totalorder %s52, %s54
      %p61 = scmp.eq.s32.totalorder %s23, 1
      %p62 = por %p60, %p61
      %p63 = scmp.ne.s32.totalorder %s54, %s55
      %p64 = scmp.eq.s32.totalorder %s23, 0
      %p65 = por %p63, %p64
      %p66 = scmp.ne.s32.totalorder %s54, %s55
      %p67 = scmp.eq.s32.totalorder %s24, 1
      %p68 = por %p66, %p67
      %p70 = scmp.ne.s32.totalorder %s55, %s69
      %p71 = scmp.eq.s32.totalorder %s24, 0
      %p72 = por %p70, %p71
      %s74 = sadd.s32 %s73, 1
      %p77 = scmp.eq.s32.totalorder %s18, 1
      %p78 = scmp.ne.s32.totalorder %s73, %s75
      %p79 = scmp.eq.s32.totalorder %s18, 0
      %p80 = por %p78, %p79
      %p81 = scmp.ne.s32.totalorder %s73, %s75
      %p82 = scmp.eq.s32.totalorder %s23, 1
      %p83 = por %p81, %p82
      %p84 = scmp.ne.s32.totalorder %s75, %s76
      %p85 = scmp.eq.s32.totalorder %s23, 0
      %p86 = por %p84, %p85
      %p87 = scmp.ne.s32.totalorder %s75, %s76
      %p88 = scmp.eq.s32.totalorder %s24, 1
      %p89 = por %p87, %p88
      %p91 = scmp.ne.s32.totalorder %s76, %s90
      %p92 = scmp.eq.s32.totalorder %s24, 0
      %p93 = por %p91, %p92
      %s95 = sadd.s32 %s94, 1
      %p98 = scmp.eq.s32.totalorder %s18, 1
      %p99 = scmp.ne.s32.totalorder %s94, %s96
      %p100 = scmp.eq.s32.totalorder %s18, 0
      %p101 = por %p99, %p100
      %p102 = scmp.ne.s32.totalorder %s94, %s96
      %p103 = scmp.eq.s32.totalorder %s23, 1
      %p104 = por %p102, %p103
      %p105 = scmp.ne.s32.totalorder %s96, %s97
      %p106 = scmp.eq.s32.totalorder %s23, 0
      %p107 = por %p105, %p106
      %p108 = scmp.ne.s32.totalorder %s96, %s97
      %p109 = scmp.eq.s32.totalorder %s24, 1
      %p110 = por %p108, %p109
      %p112 = scmp.ne.s32.totalorder %s97, %s111
      %p113 = scmp.eq.s32.totalorder %s24, 0
      %p114 = por %p112, %p113
      %s116 = sadd.s32 %s115, 1
      %p119 = scmp.eq.s32.totalorder %s18, 1
      %p120 = scmp.ne.s32.totalorder %s115, %s117
      %p121 = scmp.eq.s32.totalorder %s18, 0
      %p122 = por %p120, %p121
      %p123 = scmp.ne.s32.totalorder %s115, %s117
      %p124 = scmp.eq.s32.totalorder %s23, 1
      %p125 = por %p123, %p124
      %p126 = scmp.ne.s32.totalorder %s117, %s118
      %p127 = scmp.eq.s32.totalorder %s23, 0
      %p128 = por %p126, %p127
      %p129 = scmp.ne.s32.totalorder %s117, %s118
      %p130 = scmp.eq.s32.totalorder %s24, 1
      %p131 = por %p129, %p130
      %p133 = scmp.ne.s32.totalorder %s118, %s132
      %p134 = scmp.eq.s32.totalorder %s24, 0
      %p135 = por %p133, %p134
      %s137 = sadd.s32 %s136, 1
      %p140 = scmp.eq.s32.totalorder %s18, 1
      %p141 = scmp.ne.s32.totalorder %s136, %s138
      %p142 = scmp.eq.s32.totalorder %s18, 0
      %p143 = por %p141, %p142
      %p144 = scmp.ne.s32.totalorder %s136, %s138
      %p145 = scmp.eq.s32.totalorder %s23, 1
      %p146 = por %p144, %p145
      %p147 = scmp.ne.s32.totalorder %s138, %s139
      %p148 = scmp.eq.s32.totalorder %s23, 0
      %p149 = por %p147, %p148
      %p150 = scmp.ne.s32.totalorder %s138, %s139
      %p151 = scmp.eq.s32.totalorder %s24, 1
      %p152 = por %p150, %p151
      %p154 = scmp.ne.s32.totalorder %s139, %s153
      %p155 = scmp.eq.s32.totalorder %s24, 0
      %p156 = por %p154, %p155
      %s158 = sadd.s32 %s157, 1
      %p161 = scmp.eq.s32.totalorder %s18, 1
      %p162 = scmp.ne.s32.totalorder %s157, %s159
      %p163 = scmp.eq.s32.totalorder %s18, 0
      %p164 = por %p162, %p163
      %p165 = scmp.ne.s32.totalorder %s157, %s159
      %p166 = scmp.eq.s32.totalorder %s23, 1
      %p167 = por %p165, %p166
      %p168 = scmp.ne.s32.totalorder %s159, %s160
      %p169 = scmp.eq.s32.totalorder %s23, 0
      %p170 = por %p168, %p169
      %p171 = scmp.ne.s32.totalorder %s159, %s160
      %p172 = scmp.eq.s32.totalorder %s24, 1
      %p173 = por %p171, %p172
      %p175 = scmp.ne.s32.totalorder %s160, %s174
      %p176 = scmp.eq.s32.totalorder %s24, 0
      %p177 = por %p175, %p176
      %s178 = ssub.s32 %s18, %s25
      %p179 = scmp.eq.s32.totalorder %s178, 0
      %s181 = sadd.s32 %s180, 1
      %s182 = scalar_select %p179, %s180, %s181
      %p185 = pneg %p179
      %p186 = scmp.eq.s32.totalorder %s18, 1
      %p187 = por %p185, %p186
      %p188 = scmp.ne.s32.totalorder %s180, %s183
      %p189 = scmp.eq.s32.totalorder %s18, 0
      %p190 = por %p188, %p189
      %p191 = scmp.ne.s32.totalorder %s180, %s183
      %p192 = scmp.eq.s32.totalorder %s23, 1
      %p193 = por %p191, %p192
      %p194 = scmp.ne.s32.totalorder %s183, %s184
      %p195 = scmp.eq.s32.totalorder %s23, 0
      %p196 = por %p194, %p195
      %p197 = scmp.ne.s32.totalorder %s183, %s184
      %p198 = scmp.eq.s32.totalorder %s24, 1
      %p199 = por %p197, %p198
      %p201 = scmp.ne.s32.totalorder %s184, %s200
      %p202 = scmp.eq.s32.totalorder %s24, 0
      %p203 = por %p201, %p202
      %p204 = scmp.le.s32.totalorder 1, %s18
      %p205 = scmp.lt.s32.totalorder %s18, 3
      %p206 = pnand %p204, %p205
      %p207 = pneg %p206
      // Predicated region
      $region9: #{dnn_forward.1} parent=5 // pred_check
        _
      $region10: #{dnn_forward.1} parent=5 // pred_check_branch
        %209 = sbr.rel (%p206) target = $region12
      $region11: #{dnn_forward.1} parent=5 // pred_region
        %s210 = ssub.s32 %s18, 1
        // Predicated region
        $region13: #{dnn_forward.1} parent=11 // pred_check
          %p211 = pneg %p65
        $region14: #{dnn_forward.1} parent=11 // pred_check_branch
          %213 = sbr.rel (%p211) target = $region16
        $region15: #{dnn_forward.1} parent=11 // pred_region
          %215 = vsyncadd [#allocation3], 0
          %s216 = sshll.u32 %s1, 4
          %s217 = int_to_ptr.hbm [resolvable:$true] %s216
          %s218 = sshll.u32 [#allocation2], 4
          %s219 = int_to_ptr.vmem [resolvable:$true] %s218
          %224 = dma.hbm_to_vmem [thread:$0]  %s217, 2048, %s219, [#allocation3], 64, 64, 4
        $region16: #{dnn_forward.1} parent=11 // pred_fallthru
          _
        // Predicated region
        $region17: #{dnn_forward.1} parent=11 // pred_check
          %p225 = pneg %p86
        $region18: #{dnn_forward.1} parent=11 // pred_check_branch
          %227 = sbr.rel (%p225) target = $region20
        $region19: #{dnn_forward.1} parent=11 // pred_region
          _
        $region20: #{dnn_forward.1} parent=11 // pred_fallthru
          _
        // Predicated region
        $region21: #{dnn_forward.1} parent=11 // pred_check
          %p228 = pneg %p107
        $region22: #{dnn_forward.1} parent=11 // pred_check_branch
          %230 = sbr.rel (%p228) target = $region24
        $region23: #{dnn_forward.1} parent=11 // pred_region
          _
        $region24: #{dnn_forward.1} parent=11 // pred_fallthru
          _
        // Predicated region
        $region25: #{dnn_forward.1} parent=11 // pred_check
          %p231 = pneg %p128
        $region26: #{dnn_forward.1} parent=11 // pred_check_branch
          %233 = sbr.rel (%p231) target = $region28
        $region27: #{dnn_forward.1} parent=11 // pred_region
          _
        $region28: #{dnn_forward.1} parent=11 // pred_fallthru
          _
        // Predicated region
        $region29: #{dnn_forward.1} parent=11 // pred_check
          %p234 = pneg %p149
        $region30: #{dnn_forward.1} parent=11 // pred_check_branch
          %236 = sbr.rel (%p234) target = $region32
        $region31: #{dnn_forward.1} parent=11 // pred_region
          %238 = vsyncadd [#allocation6], 0
          %s239 = sshll.u32 %s5, 4
          %s240 = int_to_ptr.hbm [resolvable:$true] %s239
          %s241 = sshll.u32 [#allocation5], 4
          %s242 = int_to_ptr.vmem [resolvable:$true] %s241
          %247 = dma.hbm_to_vmem [thread:$0]  %s240, 1024, %s242, [#allocation6], 64, 64, 4
        $region32: #{dnn_forward.1} parent=11 // pred_fallthru
          _
        // Predicated region
        $region33: #{dnn_forward.1} parent=11 // pred_check
          %p248 = pneg %p170
        $region34: #{dnn_forward.1} parent=11 // pred_check_branch
          %250 = sbr.rel (%p248) target = $region36
        $region35: #{dnn_forward.1} parent=11 // pred_region
          _
        $region36: #{dnn_forward.1} parent=11 // pred_fallthru
          _
      $region12: #{dnn_forward.1} parent=5 // pred_fallthru
        _
      %p251 = scmp.lt.s32.totalorder %s18, 2
      // Predicated region
      $region37: #{dnn_forward.1} parent=5 // pred_check
        %p252 = pneg %p251
      $region38: #{dnn_forward.1} parent=5 // pred_check_branch
        %254 = sbr.rel (%p252) target = $region40
      $region39: #{dnn_forward.1} parent=5 // pred_region
        // Predicated region
        $region41: #{dnn_forward.1} parent=39 // pred_check
          %p255 = pneg %p38
        $region42: #{dnn_forward.1} parent=39 // pred_check_branch
          %257 = sbr.rel (%p255) target = $region44
        $region43: #{dnn_forward.1} parent=39 // pred_region
          %p258 = scmp.lt.s32.totalorder %s18, 1
          %s259 = scalar_select %p258, %s18, 1
          %s260 = smul.addr %s259, 2
          %s261 = smul.addr %s260, 4
          %s262 = scalar_lea.vmem %s0, %s261
        $region44: #{dnn_forward.1} parent=39 // pred_fallthru
          _
      $region40: #{dnn_forward.1} parent=5 // pred_fallthru
        _
      %p263 = scmp.le.s32.totalorder 1, %s18
      %p264 = scmp.lt.s32.totalorder %s18, 3
      %p265 = pnand %p263, %p264
      %p266 = pneg %p265
      // Predicated region
      $region45: #{dnn_forward.1} parent=5 // pred_check
        _
      $region46: #{dnn_forward.1} parent=5 // pred_check_branch
        %268 = sbr.rel (%p265) target = $region48
      $region47: #{dnn_forward.1} parent=5 // pred_region
        %s269 = ssub.s32 %s18, 1
        // Predicated region
        $region49: #{dnn_forward.1} parent=47 // pred_check
          %p270 = pneg %p65
        $region50: #{dnn_forward.1} parent=47 // pred_check_branch
          %272 = sbr.rel (%p270) target = $region52
        $region51: #{dnn_forward.1} parent=47 // pred_region
          %274 = dma.done [#allocation3], 2048
        $region52: #{dnn_forward.1} parent=47 // pred_fallthru
          _
        // Predicated region
        $region53: #{dnn_forward.1} parent=47 // pred_check
          %p275 = pneg %p149
        $region54: #{dnn_forward.1} parent=47 // pred_check_branch
          %277 = sbr.rel (%p275) target = $region56
        $region55: #{dnn_forward.1} parent=47 // pred_region
          %279 = dma.done [#allocation6], 1024
        $region56: #{dnn_forward.1} parent=47 // pred_fallthru
          _
        %p280 = scmp.lt.s32.totalorder %s23, 1
        %s281 = scalar_select %p280, %s23, 1
        %s282 = smul.addr %s281, 2
        %s283 = smul.addr %s282, 4
        %s284 = scalar_lea.vmem %s0, %s283
        %p285 = pneg %p44
        %p286 = pneg %p41
        %p287 = pneg %p65
        %p288 = pneg %p62
        %p289 = pneg %p86
        %p290 = pneg %p83
        %p291 = pneg %p107
        %p292 = pneg %p104
        %p293 = pneg %p128
        %p294 = pneg %p125
        %p295 = pneg %p149
        %p296 = pneg %p146
        %p297 = pneg %p170
        %p298 = pneg %p167
        %p299 = pneg %p196
        %p300 = pneg %p193
        %s301 = sand.u32 %s183, 1
        %s302 = scalar_lea.sflag [#allocation4], %s301
        %s303 = sand.u32 %s183, 1
        %s304 = smul.addr %s303, 8
        %s305 = scalar_lea.vmem [#allocation7], %s304
        %p306 = scmp.lt.s32.totalorder %s23, 1
        %s307 = scalar_select %p306, %s23, 1
        %s308 = smul.addr %s307, 2
        %s309 = smul.addr %s308, 4
        %s310 = scalar_lea.vmem %s0, %s309
        %v311 = vld [vmem:[%s310] sm:$0xff]
        %v312 = vld [vmem:[#allocation2] sm:$0xf]
        %v313 = vld [vmem:[#allocation2 + $0x4] sm:$0xf]
        %v314 = vld [vmem:[#allocation2 + $0x8] sm:$0xf]
        %v315 = vld [vmem:[#allocation2 + $0xc] sm:$0xf]
        %v316 = vld [vmem:[#allocation2 + $0x10] sm:$0xf]
        %v317 = vld [vmem:[#allocation2 + $0x14] sm:$0xf]
        %v318 = vld [vmem:[#allocation2 + $0x18] sm:$0xf]
        %v319 = vld [vmem:[#allocation2 + $0x1c] sm:$0xf]
        %v320 = vld [vmem:[#allocation2 + $0x20] sm:$0xf]
        %v321 = vld [vmem:[#allocation2 + $0x24] sm:$0xf]
        %v322 = vld [vmem:[#allocation2 + $0x28] sm:$0xf]
        %v323 = vld [vmem:[#allocation2 + $0x2c] sm:$0xf]
        %v324 = vld [vmem:[#allocation2 + $0x30] sm:$0xf]
        %v325 = vld [vmem:[#allocation2 + $0x34] sm:$0xf]
        %v326 = vld [vmem:[#allocation2 + $0x38] sm:$0xf]
        %v327 = vld [vmem:[#allocation2 + $0x3c] sm:$0xf]
        %v328 = vld [vmem:[#allocation2 + $0x40] sm:$0xf]
        %v329 = vld [vmem:[#allocation2 + $0x44] sm:$0xf]
        %v330 = vld [vmem:[#allocation2 + $0x48] sm:$0xf]
        %v331 = vld [vmem:[#allocation2 + $0x4c] sm:$0xf]
        %v332 = vld [vmem:[#allocation2 + $0x50] sm:$0xf]
        %v333 = vld [vmem:[#allocation2 + $0x54] sm:$0xf]
        %v334 = vld [vmem:[#allocation2 + $0x58] sm:$0xf]
        %v335 = vld [vmem:[#allocation2 + $0x5c] sm:$0xf]
        %v336 = vld [vmem:[#allocation2 + $0x60] sm:$0xf]
        %v337 = vld [vmem:[#allocation2 + $0x64] sm:$0xf]
        %v338 = vld [vmem:[#allocation2 + $0x68] sm:$0xf]
        %v339 = vld [vmem:[#allocation2 + $0x6c] sm:$0xf]
        %v340 = vld [vmem:[#allocation2 + $0x70] sm:$0xf]
        %v341 = vld [vmem:[#allocation2 + $0x74] sm:$0xf]
        %v342 = vld [vmem:[#allocation2 + $0x78] sm:$0xf]
        %v343 = vld [vmem:[#allocation2 + $0x7c] sm:$0xf]
        %v344 = vld [vmem:[%s2] sm:$0x1]
        %v346 = vperm.slane %v344, 0
        %v349 = vunpack.c.l.b16 %v311
        %v350 = vunpack.c.h.b16 %v311
        %v351 = vpack.c.b16 %v349, %v349
        %v352 = vpack.c.b16 %v350, %v350
        %v387 = vunpack.c.l.b16 %v312
        %v388 = vunpack.c.l.b16 %v313
        %v389 = vunpack.c.l.b16 %v314
        %v390 = vunpack.c.l.b16 %v315
        %v391 = vunpack.c.l.b16 %v316
        %v392 = vunpack.c.l.b16 %v317
        %v393 = vunpack.c.l.b16 %v318
        %v394 = vunpack.c.l.b16 %v319
        %v395 = vunpack.c.l.b16 %v320
        %v396 = vunpack.c.l.b16 %v321
        %v397 = vunpack.c.l.b16 %v322
        %v398 = vunpack.c.l.b16 %v323
        %v399 = vunpack.c.l.b16 %v324
        %v400 = vunpack.c.l.b16 %v325
        %v401 = vunpack.c.l.b16 %v326
        %v402 = vunpack.c.l.b16 %v327
        %v403 = vunpack.c.l.b16 %v328
        %v404 = vunpack.c.l.b16 %v329
        %v405 = vunpack.c.l.b16 %v330
        %v406 = vunpack.c.l.b16 %v331
        %v407 = vunpack.c.l.b16 %v332
        %v408 = vunpack.c.l.b16 %v333
        %v409 = vunpack.c.l.b16 %v334
        %v410 = vunpack.c.l.b16 %v335
        %v411 = vunpack.c.l.b16 %v336
        %v412 = vunpack.c.l.b16 %v337
        %v413 = vunpack.c.l.b16 %v338
        %v414 = vunpack.c.l.b16 %v339
        %v415 = vunpack.c.l.b16 %v340
        %v416 = vunpack.c.l.b16 %v341
        %v417 = vunpack.c.l.b16 %v342
        %v418 = vunpack.c.l.b16 %v343
        %v419 = vpack.c.b16 %v388, %v387
        %v420 = vpack.c.b16 %v390, %v389
        %v421 = vpack.c.b16 %v392, %v391
        %v422 = vpack.c.b16 %v394, %v393
        %v423 = vpack.c.b16 %v396, %v395
        %v424 = vpack.c.b16 %v398, %v397
        %v425 = vpack.c.b16 %v400, %v399
        %v426 = vpack.c.b16 %v402, %v401
        %v427 = vpack.c.b16 %v404, %v403
        %v428 = vpack.c.b16 %v406, %v405
        %v429 = vpack.c.b16 %v408, %v407
        %v430 = vpack.c.b16 %v410, %v409
        %v431 = vpack.c.b16 %v412, %v411
        %v432 = vpack.c.b16 %v414, %v413
        %v433 = vpack.c.b16 %v416, %v415
        %v434 = vpack.c.b16 %v418, %v417
        %451 = vmatpush.bf16.msra.mxu0 %v426
        %452 = vmatpush.bf16.msra.mxu0 %v425
        %453 = vmatpush.bf16.msra.mxu0 %v424
        %454 = vmatpush.bf16.msra.mxu0 %v423
        %455 = vmatpush.bf16.msra.mxu0 %v422
        %456 = vmatpush.bf16.msra.mxu0 %v421
        %457 = vmatpush.bf16.msra.mxu0 %v420
        %458 = vmatpush.bf16.msra.mxu0 %v419
        %459 = vmatmul.bf16.gmra.mxu0 %v351
        %v460 = vpop.f32.mrf.mxu0
        %v461 = vadd.f32 %v346, %v460
        %v462 = vpop.f32.mrf.mxu0
        %463 = vdwg.mxu0
        %464 = vmatpush.bf16.msra.mxu0 %v434
        %465 = vmatpush.bf16.msra.mxu0 %v433
        %466 = vmatpush.bf16.msra.mxu0 %v432
        %467 = vmatpush.bf16.msra.mxu0 %v431
        %468 = vmatpush.bf16.msra.mxu0 %v430
        %469 = vmatpush.bf16.msra.mxu0 %v429
        %470 = vmatpush.bf16.msra.mxu0 %v428
        %471 = vmatpush.bf16.msra.mxu0 %v427
        %472 = vmatmul.bf16.gmra.mxu0 %v352
        %v473 = vpop.f32.mrf.mxu0
        %v474 = vadd.f32 %v461, %v473
        %v475 = vpop.f32.mrf.mxu0
        %476 = vdwg.mxu0
        %v477 = vmax.f32 %v474, 0.0
        %v478 = vpack.c.bf16 %v477, %v477
        %v479 = vld [vmem:[%s3] sm:$0xf]
        %v480 = vld [vmem:[%s3 + $0x4] sm:$0xf]
        %v481 = vld [vmem:[%s3 + $0x8] sm:$0xf]
        %v482 = vld [vmem:[%s3 + $0xc] sm:$0xf]
        %v483 = vld [vmem:[%s3 + $0x10] sm:$0xf]
        %v484 = vld [vmem:[%s3 + $0x14] sm:$0xf]
        %v485 = vld [vmem:[%s3 + $0x18] sm:$0xf]
        %v486 = vld [vmem:[%s3 + $0x1c] sm:$0xf]
        %v487 = vld [vmem:[%s3 + $0x20] sm:$0xf]
        %v488 = vld [vmem:[%s3 + $0x24] sm:$0xf]
        %v489 = vld [vmem:[%s3 + $0x28] sm:$0xf]
        %v490 = vld [vmem:[%s3 + $0x2c] sm:$0xf]
        %v491 = vld [vmem:[%s3 + $0x30] sm:$0xf]
        %v492 = vld [vmem:[%s3 + $0x34] sm:$0xf]
        %v493 = vld [vmem:[%s3 + $0x38] sm:$0xf]
        %v494 = vld [vmem:[%s3 + $0x3c] sm:$0xf]
        %v495 = vld [vmem:[%s4] sm:$0x1]
        %v497 = vperm.slane %v495, 0
        %v515 = vunpack.c.l.b16 %v479
        %v516 = vunpack.c.l.b16 %v480
        %v517 = vunpack.c.l.b16 %v481
        %v518 = vunpack.c.l.b16 %v482
        %v519 = vunpack.c.l.b16 %v483
        %v520 = vunpack.c.l.b16 %v484
        %v521 = vunpack.c.l.b16 %v485
        %v522 = vunpack.c.l.b16 %v486
        %v523 = vunpack.c.l.b16 %v487
        %v524 = vunpack.c.l.b16 %v488
        %v525 = vunpack.c.l.b16 %v489
        %v526 = vunpack.c.l.b16 %v490
        %v527 = vunpack.c.l.b16 %v491
        %v528 = vunpack.c.l.b16 %v492
        %v529 = vunpack.c.l.b16 %v493
        %v530 = vunpack.c.l.b16 %v494
        %v531 = vpack.c.b16 %v516, %v515
        %v532 = vpack.c.b16 %v518, %v517
        %v533 = vpack.c.b16 %v520, %v519
        %v534 = vpack.c.b16 %v522, %v521
        %v535 = vpack.c.b16 %v524, %v523
        %v536 = vpack.c.b16 %v526, %v525
        %v537 = vpack.c.b16 %v528, %v527
        %v538 = vpack.c.b16 %v530, %v529
        %547 = vmatpush.bf16.msra.mxu0 %v538
        %548 = vmatpush.bf16.msra.mxu0 %v537
        %549 = vmatpush.bf16.msra.mxu0 %v536
        %550 = vmatpush.bf16.msra.mxu0 %v535
        %551 = vmatpush.bf16.msra.mxu0 %v534
        %552 = vmatpush.bf16.msra.mxu0 %v533
        %553 = vmatpush.bf16.msra.mxu0 %v532
        %554 = vmatpush.bf16.msra.mxu0 %v531
        %555 = vmatmul.bf16.gmra.mxu0 %v478
        %v556 = vpop.f32.mrf.mxu0
        %v557 = vadd.f32 %v497, %v556
        %v558 = vpop.f32.mrf.mxu0
        %559 = vdwg.mxu0
        %v560 = vmax.f32 %v557, 0.0
        %v561 = vpack.c.bf16 %v560, %v560
        %v562 = vld [vmem:[#allocation5] sm:$0xf]
        %v563 = vld [vmem:[#allocation5 + $0x4] sm:$0xf]
        %v564 = vld [vmem:[#allocation5 + $0x8] sm:$0xf]
        %v565 = vld [vmem:[#allocation5 + $0xc] sm:$0xf]
        %v566 = vld [vmem:[#allocation5 + $0x10] sm:$0xf]
        %v567 = vld [vmem:[#allocation5 + $0x14] sm:$0xf]
        %v568 = vld [vmem:[#allocation5 + $0x18] sm:$0xf]
        %v569 = vld [vmem:[#allocation5 + $0x1c] sm:$0xf]
        %v570 = vld [vmem:[#allocation5 + $0x20] sm:$0xf]
        %v571 = vld [vmem:[#allocation5 + $0x24] sm:$0xf]
        %v572 = vld [vmem:[#allocation5 + $0x28] sm:$0xf]
        %v573 = vld [vmem:[#allocation5 + $0x2c] sm:$0xf]
        %v574 = vld [vmem:[#allocation5 + $0x30] sm:$0xf]
        %v575 = vld [vmem:[#allocation5 + $0x34] sm:$0xf]
        %v576 = vld [vmem:[#allocation5 + $0x38] sm:$0xf]
        %v577 = vld [vmem:[#allocation5 + $0x3c] sm:$0xf]
        %v578 = vld [vmem:[%s6] sm:$0x1]
        %v580 = vperm.slane %v578, 0
        %v598 = vunpack.c.l.b16 %v562
        %v599 = vunpack.c.l.b16 %v563
        %v600 = vunpack.c.l.b16 %v564
        %v601 = vunpack.c.l.b16 %v565
        %v602 = vunpack.c.l.b16 %v566
        %v603 = vunpack.c.l.b16 %v567
        %v604 = vunpack.c.l.b16 %v568
        %v605 = vunpack.c.l.b16 %v569
        %v606 = vunpack.c.l.b16 %v570
        %v607 = vunpack.c.l.b16 %v571
        %v608 = vunpack.c.l.b16 %v572
        %v609 = vunpack.c.l.b16 %v573
        %v610 = vunpack.c.l.b16 %v574
        %v611 = vunpack.c.l.b16 %v575
        %v612 = vunpack.c.l.b16 %v576
        %v613 = vunpack.c.l.b16 %v577
        %v614 = vpack.c.b16 %v599, %v598
        %v615 = vpack.c.b16 %v601, %v600
        %v616 = vpack.c.b16 %v603, %v602
        %v617 = vpack.c.b16 %v605, %v604
        %v618 = vpack.c.b16 %v607, %v606
        %v619 = vpack.c.b16 %v609, %v608
        %v620 = vpack.c.b16 %v611, %v610
        %v621 = vpack.c.b16 %v613, %v612
        %630 = vmatpush.bf16.msra.mxu0 %v621
        %631 = vmatpush.bf16.msra.mxu0 %v620
        %632 = vmatpush.bf16.msra.mxu0 %v619
        %633 = vmatpush.bf16.msra.mxu0 %v618
        %634 = vmatpush.bf16.msra.mxu0 %v617
        %635 = vmatpush.bf16.msra.mxu0 %v616
        %636 = vmatpush.bf16.msra.mxu0 %v615
        %637 = vmatpush.bf16.msra.mxu0 %v614
        %638 = vmatmul.bf16.gmra.mxu0 %v561
        %v639 = vpop.f32.mrf.mxu0
        %v640 = vadd.f32 %v580, %v639
        %v641 = vpop.f32.mrf.mxu0
        %642 = vdwg.mxu0
        %v643 = vlaneseq
        %v644 = vand.u32 %v643, 127
        %vm645 = vcmp.lt.s32.totalorder %v644, 16
        %v646 = vsel %vm645, %v640, -1e+30
        %647 = vmax.xlane.f32.xlu0 %v646
        %v648 = vpop.xlane.xlu0 %647
        %v649 = vsub.f32 %v646, %v648
        %v650 = vmul.f32 %v649, 1.442695
        %v651 = vpow.pop %v650
        %652 = vadd.xlane.f32.xlu0 %v651
        %v653 = vpop.xlane.xlu0 %652
        %v654 = vlog2.pop %v653
        %v655 = vmul.f32 %v654, 0.6931472
        %v656 = vadd.f32 %v648, %v655
        %v657 = vsub.f32 %v640, %v656
        %658 = vst [vmem:[%s305] sm:$0xff] %v657
        %s659 = sand.u32 %s183, 1
        %s660 = scalar_lea.sflag [#allocation4], %s659
        %s661 = sand.u32 %s183, 1
        %s662 = smul.addr %s661, 8
        %s663 = scalar_lea.vmem [#allocation7], %s662
        // Predicated region
        $region57: #{dnn_forward.1} parent=47 // pred_check
          %p664 = pneg %p193
        $region58: #{dnn_forward.1} parent=47 // pred_check_branch
          %666 = sbr.rel (%p664) target = $region60
        $region59: #{dnn_forward.1} parent=47 // pred_region
          %668 = vsyncadd %s660, 0
          %s669 = smul.addr %s23, 8
          %s670 = scalar_lea.hbm %s7, %s669
          %s672 = sshll.u32 %s663, 4
          %s673 = int_to_ptr.vmem [resolvable:$true] %s672
          %s674 = sshll.u32 %s670, 4
          %s675 = int_to_ptr.hbm [resolvable:$true] %s674
          %677 = dma.vmem_to_hbm [thread:$0]  %s673, 128, %s675, %s660
        $region60: #{dnn_forward.1} parent=47 // pred_fallthru
          _
      $region48: #{dnn_forward.1} parent=5 // pred_fallthru
        _
      %p678 = scmp.le.s32.totalorder 2, %s18
      // Predicated region
      $region61: #{dnn_forward.1} parent=5 // pred_check
        %p679 = pneg %p678
      $region62: #{dnn_forward.1} parent=5 // pred_check_branch
        %681 = sbr.rel (%p679) target = $region64
      $region63: #{dnn_forward.1} parent=5 // pred_region
        %s682 = ssub.s32 %s18, 2
        // Predicated region
        $region65: #{dnn_forward.1} parent=63 // pred_check
          %p683 = pneg %p199
        $region66: #{dnn_forward.1} parent=63 // pred_check_branch
          %685 = sbr.rel (%p683) target = $region68
        $region67: #{dnn_forward.1} parent=63 // pred_region
          %s686 = sand.u32 %s184, 1
          %s687 = scalar_lea.sflag [#allocation4], %s686
          %s688 = sand.u32 %s184, 1
          %s689 = smul.addr %s688, 8
          %s690 = scalar_lea.vmem [#allocation7], %s689
          %692 = dma.done %s687, 128
        $region68: #{dnn_forward.1} parent=63 // pred_fallthru
          _
      $region64: #{dnn_forward.1} parent=5 // pred_fallthru
        _
    $region6: #{dnn_forward.1} parent=1 // loop_footer
      %s22 = sadd.s32 1, %s18
    $region7: #{dnn_forward.1} parent=1 // loop_footer_branch
      %17 = sbr.rel target = $region3
    $region8: #{dnn_forward.1} parent=1 // loop_exit
      _
    %693 = vsyncpa [#allocation3], 1
    %s694 = scalar_lea.sflag [#allocation3], 1
    %695 = vsyncpa %s694, 1
    %696 = vsyncpa [#allocation6], 1
    %697 = vsyncpa [#allocation4], 1
    %s698 = scalar_lea.sflag [#allocation4], 1
    %699 = vsyncpa %s698, 1

</llo_original>
